<compile_context>
chip_gen: v6e
topology: v6e:2x2x1
jax: 0.10.0
libtpu: 0.0.40
codegen_flags: <defaults>
</compile_context>

<pallas_src>
import math

import jax
import jax.numpy as jnp
from jax.experimental import pallas as pl
from jax.experimental.pallas import tpu as pltpu


def _round_up(x, m):
    return ((x + m - 1) // m) * m


# --------------------------------------------------------------------------
# Kernel 1: support = X @ W   (row-tiled over nodes, full F_in / F_out blocks)
# --------------------------------------------------------------------------
def support_kernel(x_ref, w_ref, s_ref):
    s_ref[...] = jnp.dot(
        x_ref[...], w_ref[...], preferred_element_type=jnp.float32
    ).astype(s_ref.dtype)


# --------------------------------------------------------------------------
# Kernel 2: out = adj @ support + bias
#   grid = (node_row_tiles [parallel], node_col_tiles [arbitrary, reduction])
#   f32 VMEM accumulator; bias folded into the finalize step.
# --------------------------------------------------------------------------
def aggregate_kernel(adj_ref, s_ref, b_ref, out_ref, acc_ref):
    k = pl.program_id(1)

    @pl.when(k == 0)
    def _():
        acc_ref[...] = jnp.zeros_like(acc_ref)

    acc_ref[...] += jnp.dot(
        adj_ref[...], s_ref[...], preferred_element_type=jnp.float32
    )

    @pl.when(k == pl.num_programs(1) - 1)
    def _():
        out_ref[...] = (acc_ref[...] + b_ref[...]).astype(out_ref.dtype)


def encoder_forward(x, adj, weight, bias=None, *, node_tile=256):
    """Pallas equivalent of Encoder.forward(input, adj) on a dense adjacency."""
    n, f_in = x.shape
    f_out = weight.shape[1]

    # ---- padding: lane-dense features (mult of 128), node dim mult of tile
    bt = min(node_tile, _round_up(n, 8))       # node tile (rows AND reduction cols)
    np_ = _round_up(n, bt)
    fp = _round_up(f_out, 128)

    x_p = jnp.pad(x, ((0, np_ - n), (0, 0)))
    adj_p = jnp.pad(adj, ((0, np_ - n), (0, np_ - n)))
    w_p = jnp.pad(weight, ((0, 0), (0, fp - f_out)))
    if bias is None:
        b_p = jnp.zeros((1, fp), dtype=jnp.float32)   # zero bias == no bias
    else:
        b_p = jnp.pad(bias.reshape(1, f_out).astype(jnp.float32),
                      ((0, 0), (0, fp - f_out)))

    n_row_tiles = np_ // bt

    # ---- kernel 1: support = X @ W  (kept resident in f32 for kernel 2)
    support = pl.pallas_call(
        support_kernel,
        out_shape=jax.ShapeDtypeStruct((np_, fp), jnp.float32),
        grid=(n_row_tiles,),
        in_specs=[
            pl.BlockSpec((bt, f_in), lambda i: (i, 0)),
            pl.BlockSpec((f_in, fp), lambda i: (0, 0)),
        ],
        out_specs=pl.BlockSpec((bt, fp), lambda i: (i, 0)),
        compiler_params=pltpu.CompilerParams(
            dimension_semantics=("parallel",)),
        cost_estimate=pl.CostEstimate(
            flops=2 * np_ * f_in * fp,
            transcendentals=0,
            bytes_accessed=4 * (np_ * f_in + f_in * fp + np_ * fp)),
    )(x_p, w_p)

    # ---- kernel 2: out = adj @ support + bias  (tiled, pipelined, accumulated)
    out_p = pl.pallas_call(
        aggregate_kernel,
        out_shape=jax.ShapeDtypeStruct((np_, fp), x.dtype),
        grid=(n_row_tiles, n_row_tiles),
        in_specs=[
            pl.BlockSpec((bt, bt), lambda i, k: (i, k)),   # adj tile
            pl.BlockSpec((bt, fp), lambda i, k: (k, 0)),   # support tile
            pl.BlockSpec((1, fp), lambda i, k: (0, 0)),    # bias (broadcast)
        ],
        out_specs=pl.BlockSpec((bt, fp), lambda i, k: (i, 0)),
        scratch_shapes=[pltpu.VMEM((bt, fp), jnp.float32)],
        compiler_params=pltpu.CompilerParams(
            dimension_semantics=("parallel", "arbitrary")),
        cost_estimate=pl.CostEstimate(
            flops=2 * np_ * np_ * fp,
            transcendentals=0,
            bytes_accessed=4 * (np_ * np_ + np_ * fp + fp + np_ * fp)),
    )(adj_p, support, b_p)

    return out_p[:n, :f_out]


def init_encoder_params(key, in_features, out_features, with_bias=True):
    """Mirror Encoder.reset_parameters(): uniform(-stdv, stdv), stdv=1/sqrt(out)."""
    stdv = 1.0 / math.sqrt(out_features)
    k_w, k_b = jax.random.split(key)
    weight = jax.random.uniform(k_w, (in_features, out_features),
                                dtype=jnp.float32, minval=-stdv, maxval=stdv)
    bias = None
    if with_bias:
        bias = jax.random.uniform(k_b, (out_features,),
                                  dtype=jnp.float32, minval=-stdv, maxval=stdv)
    return weight, bias


def _make_graph(key, n, f_in):
    k_x, k_adj = jax.random.split(key)
    x = jax.random.normal(k_x, (n, f_in), dtype=jnp.float32)
    adj_raw = (jax.random.uniform(k_adj, (n, n)) > 0.5).astype(jnp.float32)
    adj_raw = adj_raw + jnp.eye(n, dtype=jnp.float32)
    adj = adj_raw / jnp.sum(adj_raw, axis=1, keepdims=True)
    return x, adj


if __name__ == "__main__":
    key = jax.random.PRNGKey(0)
    k_g1, k_p1, k_g2, k_p2 = jax.random.split(key, 4)

    # --- small case (matches the toy module shapes) ---------------------
    N, F_IN, F_OUT = 8, 16, 32
    x, adj = _make_graph(k_g1, N, F_IN)
    weight, bias = init_encoder_params(k_p1, F_IN, F_OUT, with_bias=True)

    out = jax.block_until_ready(encoder_forward(x, adj, weight, bias))
    ref = adj @ (x @ weight) + bias
    assert out.shape == (N, F_OUT)
    assert jnp.allclose(out, ref, atol=1e-4, rtol=1e-4), "small-case mismatch"

    # no-bias path
    out_nb = jax.block_until_ready(encoder_forward(x, adj, weight, None))
    ref_nb = adj @ (x @ weight)
    assert jnp.allclose(out_nb, ref_nb, atol=1e-4, rtol=1e-4), "no-bias mismatch"

    # --- larger case to exercise the tiled/accumulated grid path --------
    N2, F_IN2, F_OUT2 = 512, 64, 96
    x2, adj2 = _make_graph(k_g2, N2, F_IN2)
    weight2, bias2 = init_encoder_params(k_p2, F_IN2, F_OUT2, with_bias=True)

    out2 = jax.block_until_ready(encoder_forward(x2, adj2, weight2, bias2))
    ref2 = adj2 @ (x2 @ weight2) + bias2
    assert out2.shape == (N2, F_OUT2)
    assert jnp.allclose(out2, ref2, atol=1e-3, rtol=1e-3), "tiled-case mismatch"

    print("KERNEL_OK")
</pallas_src>

<mosaic_0001>
module attributes {stable_mosaic.version = 11 : i64} {
  func.func @support_kernel(%arg0: i32, %arg1: memref<8x16xf32, #tpu.memory_space<vmem>>, %arg2: memref<16x128xf32, #tpu.memory_space<vmem>>, %arg3: memref<8x128xf32, #tpu.memory_space<vmem>>) attributes {dimension_semantics = [#tpu.dimension_semantics<parallel>], iteration_bounds = array<i64: 1>, scalar_prefetch = 0 : i64, scratch_operands = 0 : i64, tpu.core_type = #tpu.core_type<tc>, window_params = [{transform_indices = @transform_0, window_bounds = array<i64: 8, 16>}, {pipeline_mode = #tpu.pipeline_mode<synchronous>, transform_indices = @transform_1, window_bounds = array<i64: 16, 128>}, {transform_indices = @transform_2, window_bounds = array<i64: 8, 128>}]} {
    %c0 = arith.constant 0 : index
    %c0_0 = arith.constant 0 : index
    %0 = vector.load %arg1[%c0, %c0_0] : memref<8x16xf32, #tpu.memory_space<vmem>>, vector<8x16xf32>
    %c0_1 = arith.constant 0 : index
    %c0_2 = arith.constant 0 : index
    %1 = vector.load %arg2[%c0_1, %c0_2] : memref<16x128xf32, #tpu.memory_space<vmem>>, vector<16x128xf32>
    %cst = arith.constant dense<0.000000e+00> : vector<8x128xf32>
    %2 = tpu.matmul %0, %1, %cst {dimension_numbers = #tpu.dot_dimension_numbers<[1], [0], [0], [1], [0, 0, 1, 1], [], []>} : vector<8x16xf32>, vector<16x128xf32>, vector<8x128xf32> -> vector<8x128xf32>
    %c0_3 = arith.constant 0 : index
    %c0_4 = arith.constant 0 : index
    %3 = vector.load %arg3[%c0_3, %c0_4] : memref<8x128xf32, #tpu.memory_space<vmem>>, vector<8x128xf32>
    tpu.vector_store %arg3[%c0_3, %c0_4], %2 {strides = array<i32>} : memref<8x128xf32, #tpu.memory_space<vmem>>, vector<8x128xf32>,
    return
  }
  func.func @transform_0(%arg0: i32) -> (i32, i32) {
    %c0_i32 = arith.constant 0 : i32
    %c0_i32_0 = arith.constant 0 : i32
    return %arg0, %c0_i32 : i32, i32
  }
  func.func @transform_1(%arg0: i32) -> (i32, i32) {
    %c0_i32 = arith.constant 0 : i32
    %c0_i32_0 = arith.constant 0 : i32
    %c0_i32_1 = arith.constant 0 : i32
    return %c0_i32, %c0_i32_0 : i32, i32
  }
  func.func @transform_2(%arg0: i32) -> (i32, i32) {
    %c0_i32 = arith.constant 0 : i32
    %c0_i32_0 = arith.constant 0 : i32
    return %arg0, %c0_i32 : i32, i32
  }
}

</mosaic_0001>

<llo_original>
// kernel: tpu_custom_call.1
$region0: #{tpu_custom_call.1}
  #allocation0 [shape = 'u32[]', space=smem, size = 0x4, offset = 0x4, fixed_abs, tag = 'smem constant byte address 0x4 - core index']
  #allocation1 [shape = 'u32[144,128]{1,0:T(1,128)}', space=vmem, size = 0x12000, scoped, tag = 'internal scratch']
  %s0 = inlined_call_operand.hbm [shape: f32[8,16], index: 0, kind: input, shape index: {}]
  %s1 = inlined_call_operand.hbm [shape: f32[16,128], index: 1, kind: input, shape index: {}]
  %s2 = inlined_call_operand.hbm [shape: f32[8,128], index: 2, kind: output, shape index: {}]
  %s3 = sld [smem:[#allocation0]]
  $region26: #{tpu_custom_call.1} parent=0
    _
  %s5 = ssub.s32 1, %s3
  %s6 = scalar_select 0, %s5, %s3
  $region1: #{tpu_custom_call.1} parent=0
    #allocation2 [shape = 'u8[4096]{0}', space=vmem, size = 0x1000, scoped, tag = 'input window, operand 0, single buffered']
    #allocation3 [shape = 's32[1]{0}', space=sflag, size = 0x4, scoped, tag = 'scoped memory for tpu_custom_call.1']
    #allocation4 [shape = 's32[1]{0}', space=sflag, size = 0x4, scoped, tag = 'scoped memory for tpu_custom_call.1']
    #allocation5 [shape = 'u8[8192]{0}', space=vmem, size = 0x2000, scoped, tag = 'input window, operand 1, single buffered']
    #allocation6 [shape = 's32[1]{0}', space=sflag, size = 0x4, scoped, tag = 'scoped memory for tpu_custom_call.1']
    #allocation7 [shape = 'u8[4096]{0}', space=vmem, size = 0x1000, scoped, tag = 'output window, operand 0, single buffered']
    %7 = vsyncpa [#allocation3], 0
    %8 = vsyncpa [#allocation6], 0
    %9 = vsyncpa [#allocation4], 0
    // Predicated region
    $region2: #{tpu_custom_call.1} parent=1 // pred_check
      _
    $region3: #{tpu_custom_call.1} parent=1 // pred_check_branch
      %11 = sbr.rel (0) target = $region5
    $region4: #{tpu_custom_call.1} parent=1 // pred_region
      %s13 = ssub.s32 128, 128
      %14 = vsyncadd [#allocation3], %s13
      %s16 = sshll.u32 [#allocation2], 4
      %s17 = int_to_ptr.vmem [resolvable:$true] %s16
      %19 = dma.hbm_to_vmem [thread:$0]  %s0, 128, %s17, [#allocation3]
    $region5: #{tpu_custom_call.1} parent=1 // pred_fallthru
      _
    // Predicated region
    $region6: #{tpu_custom_call.1} parent=1 // pred_check
      _
    $region7: #{tpu_custom_call.1} parent=1 // pred_check_branch
      %21 = sbr.rel (0) target = $region9
    $region8: #{tpu_custom_call.1} parent=1 // pred_region
      %s23 = ssub.s32 256, 256
      %24 = vsyncadd [#allocation6], %s23
      %s25 = sshll.u32 [#allocation5], 4
      %s26 = int_to_ptr.vmem [resolvable:$true] %s25
      %31 = dma.hbm_to_vmem [thread:$0]  %s1, 256, %s26, [#allocation6], 128, 128, 8
    $region9: #{tpu_custom_call.1} parent=1 // pred_fallthru
      _
    // Predicated region
    $region10: #{tpu_custom_call.1} parent=1 // pred_check
      _
    $region11: #{tpu_custom_call.1} parent=1 // pred_check_branch
      %33 = sbr.rel (0) target = $region13
    $region12: #{tpu_custom_call.1} parent=1 // pred_region
      %34 = dma.done [#allocation3], 128
    $region13: #{tpu_custom_call.1} parent=1 // pred_fallthru
      _
    // Predicated region
    $region14: #{tpu_custom_call.1} parent=1 // pred_check
      _
    $region15: #{tpu_custom_call.1} parent=1 // pred_check_branch
      %36 = sbr.rel (0) target = $region17
    $region16: #{tpu_custom_call.1} parent=1 // pred_region
      %37 = dma.done [#allocation6], 256
    $region17: #{tpu_custom_call.1} parent=1 // pred_fallthru
      _
    %v38 = vld [vmem:[#allocation2] sm:$0xff]
    %v39 = vld [vmem:[#allocation5] sm:$0xff]
    %v40 = vld [vmem:[#allocation5 + $0x8] sm:$0xff]
    %vm41 = vcmask 130048
    %v43 = vsel %vm41, %v38, 0
    %45 = vmatprep.subr.mxu0 0.0
    %46 = vmatpush1.msra.mxu0 0.0
    %47 = vmatprep.subr.mxu0 0.0
    %48 = vmatpush1.msra.mxu0 0.0
    %49 = vmatprep.subr.mxu0 0.0
    %50 = vmatpush1.msra.mxu0 0.0
    %51 = vmatprep.subr.mxu0 0.0
    %52 = vmatpush1.msra.mxu0 0.0
    %53 = vmatprep.subr.mxu0 0.0
    %54 = vmatpush1.msra.mxu0 0.0
    %55 = vmatprep.subr.mxu0 0.0
    %56 = vmatpush1.msra.mxu0 0.0
    %57 = vmatprep.subr.mxu0 0.0
    %58 = vmatpush1.msra.mxu0 0.0
    %59 = vmatprep.subr.mxu0 0.0
    %60 = vmatpush1.msra.mxu0 0.0
    %61 = vmatprep.subr.mxu0 0.0
    %62 = vmatpush1.msra.mxu0 0.0
    %63 = vmatprep.subr.mxu0 0.0
    %64 = vmatpush1.msra.mxu0 0.0
    %65 = vmatprep.subr.mxu0 0.0
    %66 = vmatpush1.msra.mxu0 0.0
    %67 = vmatprep.subr.mxu0 0.0
    %68 = vmatpush1.msra.mxu0 0.0
    %69 = vmatprep.subr.mxu0 0.0
    %70 = vmatpush1.msra.mxu0 0.0
    %71 = vmatprep.subr.mxu0 0.0
    %72 = vmatpush1.msra.mxu0 0.0
    %73 = vmatprep.subr.mxu0 0.0
    %74 = vmatpush1.msra.mxu0 %v40
    %75 = vmatprep.subr.mxu0 0.0
    %76 = vmatpush1.msra.mxu0 %v39
    %77 = vmatprep.subr.mxu0 0.0
    %78 = vmatpush2.msra.mxu0 0.0
    %79 = vmatprep.subr.mxu0 0.0
    %80 = vmatpush2.msra.mxu0 0.0
    %81 = vmatprep.subr.mxu0 0.0
    %82 = vmatpush2.msra.mxu0 0.0
    %83 = vmatprep.subr.mxu0 0.0
    %84 = vmatpush2.msra.mxu0 0.0
    %85 = vmatprep.subr.mxu0 0.0
    %86 = vmatpush2.msra.mxu0 0.0
    %87 = vmatprep.subr.mxu0 0.0
    %88 = vmatpush2.msra.mxu0 0.0
    %89 = vmatprep.subr.mxu0 0.0
    %90 = vmatpush2.msra.mxu0 0.0
    %91 = vmatprep.subr.mxu0 0.0
    %92 = vmatpush2.msra.mxu0 0.0
    %93 = vmatprep.subr.mxu0 0.0
    %94 = vmatpush2.msra.mxu0 0.0
    %95 = vmatprep.subr.mxu0 0.0
    %96 = vmatpush2.msra.mxu0 0.0
    %97 = vmatprep.subr.mxu0 0.0
    %98 = vmatpush2.msra.mxu0 0.0
    %99 = vmatprep.subr.mxu0 0.0
    %100 = vmatpush2.msra.mxu0 0.0
    %101 = vmatprep.subr.mxu0 0.0
    %102 = vmatpush2.msra.mxu0 0.0
    %103 = vmatprep.subr.mxu0 0.0
    %104 = vmatpush2.msra.mxu0 0.0
    %105 = vmatprep.subr.mxu0 0.0
    %106 = vmatpush2.msra.mxu0 0.0
    %107 = vmatprep.subr.mxu0 0.0
    %108 = vmatpush2.msra.mxu0 0.0
    %109 = vmatprep.mubr.f32.mxu0 0.0
    %110 = vmatmul.mubr.f32.gmra.mxu0 %v43
    %v111 = vpop.f32.mrf.mxu0
    %v112 = vadd.f32 0.0, %v111
    %v113 = vpop.f32.mrf.mxu0
    %114 = vdwg.mxu0
    %115 = vst [vmem:[#allocation7] sm:$0xff] %v112
    // Predicated region
    $region18: #{tpu_custom_call.1} parent=1 // pred_check
      _
    $region19: #{tpu_custom_call.1} parent=1 // pred_check_branch
      %117 = sbr.rel (0) target = $region21
    $region20: #{tpu_custom_call.1} parent=1 // pred_region
      %s119 = ssub.s32 128, 128
      %120 = vsyncadd [#allocation4], %s119
      %s122 = sshll.u32 [#allocation7], 4
      %s123 = int_to_ptr.vmem [resolvable:$true] %s122
      %125 = dma.vmem_to_hbm [thread:$0]  %s123, 128, %s2, [#allocation4]
    $region21: #{tpu_custom_call.1} parent=1 // pred_fallthru
      _
    // Predicated region
    $region22: #{tpu_custom_call.1} parent=1 // pred_check
      _
    $region23: #{tpu_custom_call.1} parent=1 // pred_check_branch
      %127 = sbr.rel (0) target = $region25
    $region24: #{tpu_custom_call.1} parent=1 // pred_region
      %128 = dma.done [#allocation4], 128
    $region25: #{tpu_custom_call.1} parent=1 // pred_fallthru
      _
    %129 = vsyncpa [#allocation3], 1
    %130 = vsyncpa [#allocation6], 1
    %131 = vsyncpa [#allocation4], 1

</llo_original>
